<compile_context>
chip_gen: v7x
topology: tpu7x:2x2x1
jax: 0.10.0
libtpu: 0.0.40
codegen_flags: <defaults>
</compile_context>

<pallas_src>
import functools

import jax
import jax.numpy as jnp
from jax.experimental import pallas as pl
from jax.experimental.pallas import tpu as pltpu

_EPS = 1e-6  # F.pairwise_distance default eps


def _triplet_kernel(margin, a_ref, p_ref, n_ref, o_ref):
    # (block_b, D) VMEM tiles; upcast so low-precision inputs accumulate the
    # sum of squares in f32 (the v5e VPU has no bf16 arithmetic anyway).
    a = a_ref[...].astype(jnp.float32)
    p = p_ref[...].astype(jnp.float32)
    n = n_ref[...].astype(jnp.float32)

    # pairwise_distance: eps added elementwise to the difference, then L2 norm.
    dp = a - p + _EPS
    dn = a - n + _EPS

    # Reduce without keepdims: cross-lane reduce goes to the XLU, sqrt to the
    # EUP, result is a dense (block_b,) vector.
    dap = jnp.sqrt(jnp.sum(dp * dp, axis=-1))
    dan = jnp.sqrt(jnp.sum(dn * dn, axis=-1))
    loss = jnp.maximum(dap - dan + margin, 0.0)

    # Lane-dense store: one full (1, block_b) output row per grid step.
    o_ref[...] = loss[None, :].astype(o_ref.dtype)


def _round_up(x, m):
    return ((x + m - 1) // m) * m


def _vmem_limit_bytes():
    """Generation-gated scoped-VMEM limit: ~3/4 of physical on v7x (64 MiB per
    TensorCore -> 48 MiB), capped at 64 MiB on v5e/v6e (128 MiB physical)."""
    try:
        cap = int(getattr(pltpu.get_tpu_info(), "vmem_capacity_bytes", 128 << 20))
    except Exception:
        cap = 64 << 20  # conservative fallback (v7x-sized)
    return int(min(64 << 20, cap * 3 // 4))


def _pick_block_b(B, D, dtype, target_tile_bytes):
    """Rows per grid step.  Sized so one (block_b, D) input tile is about
    target_tile_bytes (3 inputs x 2 pipeline buffers + f32 temporaries stay
    inside the scoped VMEM limit), rounded to the dtype's sublane packing
    (8 f32 / 16 bf16 / 32 int8) and, for large batches, to a multiple of 128
    so the (1, block_b) output row is an unmasked lane-dense store."""
    itemsize = jnp.dtype(dtype).itemsize
    sub = max(8, 32 // max(1, itemsize))
    cap_rows = max(sub, target_tile_bytes // max(1, D * itemsize))

    if cap_rows >= 128 and B >= 128:
        block_b = (cap_rows // 128) * 128
        block_b = min(block_b, _round_up(B, 128))
    else:
        block_b = max(sub, (cap_rows // sub) * sub)
        block_b = min(block_b, _round_up(B, sub))

    # v7x megacore: with "parallel" semantics each TensorCore wants >= 2 grid
    # steps so its own prologue/epilogue DMA overlaps with compute.  Only
    # split when each step still moves a healthy (>=128-row) DMA.
    min_steps = 4
    if pl.cdiv(B, block_b) < min_steps and B >= min_steps * 128:
        block_b = _round_up(pl.cdiv(B, min_steps), 128)

    return max(sub, block_b)


def triplet_loss(A, P, N, margin=1.0, block_b=None):
    """Pallas implementation of TripletLoss.forward. Returns per-sample (B,)."""
    assert A.shape == P.shape == N.shape
    assert A.ndim == 2
    B, D = A.shape
    itemsize = jnp.dtype(A.dtype).itemsize

    vmem_limit = _vmem_limit_bytes()
    if block_b is None:
        # ~1/12 of the scoped limit per input tile: 3 inputs x 2 pipeline
        # buffers = 6 resident tiles, plus f32 temporaries and the output row.
        block_b = _pick_block_b(B, D, A.dtype, vmem_limit // 12)

    # Arbitrary B: the last block may extend past the batch; OOB rows read
    # padding, their junk losses land past index B and are sliced off below.
    grid_b = pl.cdiv(B, block_b)

    # TODO(synk): for very large D (many-K embedding dims), add a second
    # "arbitrary" grid axis over D with an f32 partial sum-of-squares VMEM
    # scratch (init at k==0 via pl.when, sqrt/hinge/store at k==last) so
    # block_b can stay >=128 rows instead of shrinking.
    # TODO(synk): if margin varies at runtime, pass it as an SMEM scalar
    # instead of baking it in via functools.partial (avoids recompiles).

    in_spec = pl.BlockSpec((block_b, D), lambda i: (i, 0))
    out_spec = pl.BlockSpec((1, block_b), lambda i: (i, 0))

    cost = pl.CostEstimate(
        flops=8 * B * D,                 # sub / +eps / mul / accumulate, x2 distances
        transcendentals=2 * B,           # two sqrt per sample
        bytes_accessed=3 * B * D * itemsize + 4 * B,
    )

    out = pl.pallas_call(
        functools.partial(_triplet_kernel, float(margin)),
        out_shape=jax.ShapeDtypeStruct((grid_b, block_b), jnp.float32),
        grid=(grid_b,),
        in_specs=[in_spec, in_spec, in_spec],
        out_specs=out_spec,
        compiler_params=pltpu.CompilerParams(
            dimension_semantics=("parallel",),
            vmem_limit_bytes=vmem_limit,
        ),
        cost_estimate=cost,
    )(A, P, N)

    # Row-major reshape restores per-sample order: row i holds samples
    # [i*block_b, (i+1)*block_b); padded-tail junk is dropped by the slice.
    return out.reshape(grid_b * block_b)[:B]


def _reference(A, P, N, margin=1.0):
    A = A.astype(jnp.float32)
    P = P.astype(jnp.float32)
    N = N.astype(jnp.float32)
    dap = jnp.sqrt(jnp.sum((A - P + _EPS) ** 2, axis=-1))
    dan = jnp.sqrt(jnp.sum((A - N + _EPS) ** 2, axis=-1))
    return jnp.maximum(dap - dan + margin, 0.0)


if __name__ == "__main__":
    key = jax.random.PRNGKey(0)
    kA, kP, kN = jax.random.split(key, 3)

    margin = 1.0
    B, D = 64, 128
    A = jax.random.normal(kA, (B, D), dtype=jnp.float32)
    P = jax.random.normal(kP, (B, D), dtype=jnp.float32)
    N = jax.random.normal(kN, (B, D), dtype=jnp.float32)

    # 1) f32, auto block_b (single dense block, grid=(1,)).
    out = jax.block_until_ready(triplet_loss(A, P, N, margin=margin))
    ref = _reference(A, P, N, margin=margin)
    assert out.shape == (B,)
    assert jnp.allclose(out, ref, atol=1e-5, rtol=1e-5)

    # 2) Explicit block_b=32 -> grid=(2,): multi-step "parallel" axis with the
    #    lane-dense (1, block_b) output rows.
    out2 = jax.block_until_ready(triplet_loss(A, P, N, margin=margin, block_b=32))
    assert jnp.allclose(out2, ref, atol=1e-5, rtol=1e-5)

    # 3) Awkward batch (B=50, block_b=16 -> grid=(4,)): exercises the cdiv
    #    grid with a padded tail block (OOB rows sliced off by the wrapper).
    B2 = 50
    A2, P2, N2 = A[:B2], P[:B2], N[:B2]
    out3 = jax.block_until_ready(triplet_loss(A2, P2, N2, margin=margin, block_b=16))
    ref3 = _reference(A2, P2, N2, margin=margin)
    assert out3.shape == (B2,)
    assert jnp.allclose(out3, ref3, atol=1e-5, rtol=1e-5)

    # 4) bf16 inputs (half the HBM traffic; biggest win on v5e); the kernel
    #    accumulates in f32.  Looser tolerance = input quantization only.
    Ab, Pb, Nb = (x.astype(jnp.bfloat16) for x in (A, P, N))
    out4 = jax.block_until_ready(triplet_loss(Ab, Pb, Nb, margin=margin))
    ref4 = _reference(Ab, Pb, Nb, margin=margin)
    assert out4.shape == (B,)
    assert jnp.allclose(out4, ref4, atol=5e-2, rtol=5e-2)

    print("KERNEL_OK")
</pallas_src>

<mosaic_0001>
module attributes {stable_mosaic.version = 11 : i64} {
  func.func @_triplet_kernel(%arg0: i32, %arg1: memref<64x128xf32, #tpu.memory_space<vmem>>, %arg2: memref<64x128xf32, #tpu.memory_space<vmem>>, %arg3: memref<64x128xf32, #tpu.memory_space<vmem>>, %arg4: memref<1x64xf32, #tpu.memory_space<vmem>>) attributes {dimension_semantics = [#tpu.dimension_semantics<parallel>], iteration_bounds = array<i64: 1>, scalar_prefetch = 0 : i64, scratch_operands = 0 : i64, tpu.core_type = #tpu.core_type<tc>, window_params = [{transform_indices = @transform_0, window_bounds = array<i64: 64, 128>}, {transform_indices = @transform_1, window_bounds = array<i64: 64, 128>}, {transform_indices = @transform_2, window_bounds = array<i64: 64, 128>}, {transform_indices = @transform_3, window_bounds = array<i64: 1, 64>}]} {
    %c0 = arith.constant 0 : index
    %c0_0 = arith.constant 0 : index
    %0 = vector.load %arg1[%c0, %c0_0] : memref<64x128xf32, #tpu.memory_space<vmem>>, vector<64x128xf32>
    %c0_1 = arith.constant 0 : index
    %c0_2 = arith.constant 0 : index
    %1 = vector.load %arg2[%c0_1, %c0_2] : memref<64x128xf32, #tpu.memory_space<vmem>>, vector<64x128xf32>
    %c0_3 = arith.constant 0 : index
    %c0_4 = arith.constant 0 : index
    %2 = vector.load %arg3[%c0_3, %c0_4] : memref<64x128xf32, #tpu.memory_space<vmem>>, vector<64x128xf32>
    %3 = arith.subf %0, %1 : vector<64x128xf32>
    %cst = arith.constant 9.99999997E-7 : f32
    %4 = vector.broadcast %cst : f32 to vector<64x128xf32>
    %5 = arith.addf %3, %4 : vector<64x128xf32>
    %6 = arith.subf %0, %2 : vector<64x128xf32>
    %cst_5 = arith.constant 9.99999997E-7 : f32
    %7 = vector.broadcast %cst_5 : f32 to vector<64x128xf32>
    %8 = arith.addf %6, %7 : vector<64x128xf32>
    %9 = arith.mulf %5, %5 : vector<64x128xf32>
    %cst_6 = arith.constant dense<0.000000e+00> : vector<64xf32>
    %10 = vector.multi_reduction <add>, %9, %cst_6 [1] : vector<64x128xf32> to vector<64xf32>
    %11 = math.sqrt %10 : vector<64xf32>
    %12 = arith.mulf %8, %8 : vector<64x128xf32>
    %cst_7 = arith.constant dense<0.000000e+00> : vector<64xf32>
    %13 = vector.multi_reduction <add>, %12, %cst_7 [1] : vector<64x128xf32> to vector<64xf32>
    %14 = math.sqrt %13 : vector<64xf32>
    %15 = arith.subf %11, %14 : vector<64xf32>
    %cst_8 = arith.constant 1.000000e+00 : f32
    %16 = vector.broadcast %cst_8 : f32 to vector<64xf32>
    %17 = arith.addf %15, %16 : vector<64xf32>
    %cst_9 = arith.constant 0.000000e+00 : f32
    %18 = vector.broadcast %cst_9 : f32 to vector<64xf32>
    %19 = arith.maximumf %17, %18 : vector<64xf32>
    %20 = vector.shape_cast %19 : vector<64xf32> to vector<1x64xf32>
    %c0_10 = arith.constant 0 : index
    %c0_11 = arith.constant 0 : index
    %21 = vector.load %arg4[%c0_10, %c0_11] : memref<1x64xf32, #tpu.memory_space<vmem>>, vector<1x64xf32>
    tpu.vector_store %arg4[%c0_10, %c0_11], %20 {strides = array<i32>} : memref<1x64xf32, #tpu.memory_space<vmem>>, vector<1x64xf32>,
    return
  }
  func.func @transform_0(%arg0: i32) -> (i32, i32) {
    %c0_i32 = arith.constant 0 : i32
    %c0_i32_0 = arith.constant 0 : i32
    return %arg0, %c0_i32 : i32, i32
  }
  func.func @transform_1(%arg0: i32) -> (i32, i32) {
    %c0_i32 = arith.constant 0 : i32
    %c0_i32_0 = arith.constant 0 : i32
    return %arg0, %c0_i32 : i32, i32
  }
  func.func @transform_2(%arg0: i32) -> (i32, i32) {
    %c0_i32 = arith.constant 0 : i32
    %c0_i32_0 = arith.constant 0 : i32
    return %arg0, %c0_i32 : i32, i32
  }
  func.func @transform_3(%arg0: i32) -> (i32, i32) {
    %c0_i32 = arith.constant 0 : i32
    %c0_i32_0 = arith.constant 0 : i32
    return %arg0, %c0_i32 : i32, i32
  }
}

</mosaic_0001>

<llo_original>
// kernel: tpu_custom_call.1
$region0: #{tpu_custom_call.1}
  #allocation0 [shape = 'u32[]', space=smem, size = 0x4, offset = 0x4, fixed_abs, tag = 'smem constant byte address 0x4 - core index']
  #allocation1 [shape = 'u32[144,128]{1,0:T(1,128)}', space=vmem, size = 0x12000, scoped, tag = 'internal scratch']
  %s0 = inlined_call_operand.hbm [shape: f32[64,128], index: 0, kind: input, shape index: {}]
  %s1 = inlined_call_operand.hbm [shape: f32[64,128], index: 1, kind: input, shape index: {}]
  %s2 = inlined_call_operand.hbm [shape: f32[64,128], index: 2, kind: input, shape index: {}]
  %s3 = inlined_call_operand.hbm [shape: f32[1,64], index: 3, kind: output, shape index: {}]
  %s4 = sld [smem:[#allocation0]]
  $region34: #{tpu_custom_call.1} parent=0
    _
  %s6 = ssub.s32 1, %s4
  %s7 = scalar_select 0, %s6, %s4
  $region1: #{tpu_custom_call.1} parent=0
    #allocation2 [shape = 'u8[32768]{0}', space=vmem, size = 0x8000, scoped, tag = 'input window, operand 0, single buffered']
    #allocation3 [shape = 's32[1]{0}', space=sflag, size = 0x4, scoped, tag = 'scoped memory for tpu_custom_call.1']
    #allocation4 [shape = 's32[1]{0}', space=sflag, size = 0x4, scoped, tag = 'scoped memory for tpu_custom_call.1']
    #allocation5 [shape = 'u8[32768]{0}', space=vmem, size = 0x8000, scoped, tag = 'input window, operand 1, single buffered']
    #allocation6 [shape = 's32[1]{0}', space=sflag, size = 0x4, scoped, tag = 'scoped memory for tpu_custom_call.1']
    #allocation7 [shape = 'u8[32768]{0}', space=vmem, size = 0x8000, scoped, tag = 'input window, operand 2, single buffered']
    #allocation8 [shape = 'u8[512]{0}', space=vmem, size = 0x400, scoped, tag = 'output window, operand 0, single buffered']
    %8 = vsyncpa [#allocation3], 0
    %9 = vsyncpa [#allocation6], 0
    %10 = vsyncpa [#allocation4], 0
    // Predicated region
    $region2: #{tpu_custom_call.1} parent=1 // pred_check
      _
    $region3: #{tpu_custom_call.1} parent=1 // pred_check_branch
      %12 = sbr.rel (0) target = $region5
    $region4: #{tpu_custom_call.1} parent=1 // pred_region
      %s14 = ssub.s32 1024, 1024
      %15 = vsyncadd [#allocation3], %s14
      %s16 = sshll.u32 [#allocation2], 4
      %s17 = int_to_ptr.vmem [resolvable:$true] %s16
      %22 = dma.hbm_to_vmem [thread:$0]  %s0, 1024, %s17, [#allocation3], 128, 128, 8
    $region5: #{tpu_custom_call.1} parent=1 // pred_fallthru
      _
    // Predicated region
    $region6: #{tpu_custom_call.1} parent=1 // pred_check
      _
    $region7: #{tpu_custom_call.1} parent=1 // pred_check_branch
      %24 = sbr.rel (0) target = $region9
    $region8: #{tpu_custom_call.1} parent=1 // pred_region
      %s26 = ssub.s32 1024, 1024
      %27 = vsyncadd [#allocation6], %s26
      %s28 = sshll.u32 [#allocation5], 4
      %s29 = int_to_ptr.vmem [resolvable:$true] %s28
      %34 = dma.hbm_to_vmem [thread:$0]  %s1, 1024, %s29, [#allocation6], 128, 128, 8
    $region9: #{tpu_custom_call.1} parent=1 // pred_fallthru
      _
    // Predicated region
    $region10: #{tpu_custom_call.1} parent=1 // pred_check
      _
    $region11: #{tpu_custom_call.1} parent=1 // pred_check_branch
      %36 = sbr.rel (0) target = $region13
    $region12: #{tpu_custom_call.1} parent=1 // pred_region
      %s38 = ssub.s32 1024, 1024
      %39 = vsyncadd [#allocation6], %s38
      %s40 = sshll.u32 [#allocation7], 4
      %s41 = int_to_ptr.vmem [resolvable:$true] %s40
      %46 = dma.hbm_to_vmem [thread:$0]  %s2, 1024, %s41, [#allocation6], 128, 128, 8
    $region13: #{tpu_custom_call.1} parent=1 // pred_fallthru
      _
    // Predicated region
    $region14: #{tpu_custom_call.1} parent=1 // pred_check
      _
    $region15: #{tpu_custom_call.1} parent=1 // pred_check_branch
      %48 = sbr.rel (0) target = $region17
    $region16: #{tpu_custom_call.1} parent=1 // pred_region
      %49 = dma.done [#allocation3], 1024
    $region17: #{tpu_custom_call.1} parent=1 // pred_fallthru
      _
    // Predicated region
    $region18: #{tpu_custom_call.1} parent=1 // pred_check
      _
    $region19: #{tpu_custom_call.1} parent=1 // pred_check_branch
      %51 = sbr.rel (0) target = $region21
    $region20: #{tpu_custom_call.1} parent=1 // pred_region
      %52 = dma.done [#allocation6], 1024
    $region21: #{tpu_custom_call.1} parent=1 // pred_fallthru
      _
    // Predicated region
    $region22: #{tpu_custom_call.1} parent=1 // pred_check
      _
    $region23: #{tpu_custom_call.1} parent=1 // pred_check_branch
      %54 = sbr.rel (0) target = $region25
    $region24: #{tpu_custom_call.1} parent=1 // pred_region
      %55 = dma.done [#allocation6], 1024
    $region25: #{tpu_custom_call.1} parent=1 // pred_fallthru
      _
    %v56 = vld [vmem:[#allocation2] sm:$0xff]
    %v57 = vld [vmem:[#allocation2 + $0x8] sm:$0xff]
    %v58 = vld [vmem:[#allocation2 + $0x10] sm:$0xff]
    %v59 = vld [vmem:[#allocation2 + $0x18] sm:$0xff]
    %v60 = vld [vmem:[#allocation2 + $0x20] sm:$0xff]
    %v61 = vld [vmem:[#allocation2 + $0x28] sm:$0xff]
    %v62 = vld [vmem:[#allocation2 + $0x30] sm:$0xff]
    %v63 = vld [vmem:[#allocation2 + $0x38] sm:$0xff]
    %v64 = vld [vmem:[#allocation5] sm:$0xff]
    %v65 = vld [vmem:[#allocation5 + $0x8] sm:$0xff]
    %v66 = vld [vmem:[#allocation5 + $0x10] sm:$0xff]
    %v67 = vld [vmem:[#allocation5 + $0x18] sm:$0xff]
    %v68 = vld [vmem:[#allocation5 + $0x20] sm:$0xff]
    %v69 = vld [vmem:[#allocation5 + $0x28] sm:$0xff]
    %v70 = vld [vmem:[#allocation5 + $0x30] sm:$0xff]
    %v71 = vld [vmem:[#allocation5 + $0x38] sm:$0xff]
    %v72 = vld [vmem:[#allocation7] sm:$0xff]
    %v73 = vld [vmem:[#allocation7 + $0x8] sm:$0xff]
    %v74 = vld [vmem:[#allocation7 + $0x10] sm:$0xff]
    %v75 = vld [vmem:[#allocation7 + $0x18] sm:$0xff]
    %v76 = vld [vmem:[#allocation7 + $0x20] sm:$0xff]
    %v77 = vld [vmem:[#allocation7 + $0x28] sm:$0xff]
    %v78 = vld [vmem:[#allocation7 + $0x30] sm:$0xff]
    %v79 = vld [vmem:[#allocation7 + $0x38] sm:$0xff]
    %v80 = vsub.f32 %v56, %v64
    %v81 = vsub.f32 %v57, %v65
    %v82 = vsub.f32 %v58, %v66
    %v83 = vsub.f32 %v59, %v67
    %v84 = vsub.f32 %v60, %v68
    %v85 = vsub.f32 %v61, %v69
    %v86 = vsub.f32 %v62, %v70
    %v87 = vsub.f32 %v63, %v71
    %v88 = vadd.f32 %v80, 1e-06
    %v89 = vadd.f32 %v81, 1e-06
    %v90 = vadd.f32 %v82, 1e-06
    %v91 = vadd.f32 %v83, 1e-06
    %v92 = vadd.f32 %v84, 1e-06
    %v93 = vadd.f32 %v85, 1e-06
    %v94 = vadd.f32 %v86, 1e-06
    %v95 = vadd.f32 %v87, 1e-06
    %v96 = vsub.f32 %v56, %v72
    %v97 = vsub.f32 %v57, %v73
    %v98 = vsub.f32 %v58, %v74
    %v99 = vsub.f32 %v59, %v75
    %v100 = vsub.f32 %v60, %v76
    %v101 = vsub.f32 %v61, %v77
    %v102 = vsub.f32 %v62, %v78
    %v103 = vsub.f32 %v63, %v79
    %v104 = vadd.f32 %v96, 1e-06
    %v105 = vadd.f32 %v97, 1e-06
    %v106 = vadd.f32 %v98, 1e-06
    %v107 = vadd.f32 %v99, 1e-06
    %v108 = vadd.f32 %v100, 1e-06
    %v109 = vadd.f32 %v101, 1e-06
    %v110 = vadd.f32 %v102, 1e-06
    %v111 = vadd.f32 %v103, 1e-06
    %v112 = vmul.f32 %v88, %v88
    %v113 = vmul.f32 %v89, %v89
    %v114 = vmul.f32 %v90, %v90
    %v115 = vmul.f32 %v91, %v91
    %v116 = vmul.f32 %v92, %v92
    %v117 = vmul.f32 %v93, %v93
    %v118 = vmul.f32 %v94, %v94
    %v119 = vmul.f32 %v95, %v95
    %120 = vadd.xlane.f32.xlu0 %v112
    %v121 = vpop.xlane.xlu0 %120
    %122 = vadd.xlane.f32.xlu0 %v113
    %v123 = vpop.xlane.xlu0 %122
    %124 = vadd.xlane.f32.xlu0 %v114
    %v125 = vpop.xlane.xlu0 %124
    %126 = vadd.xlane.f32.xlu0 %v115
    %v127 = vpop.xlane.xlu0 %126
    %128 = vadd.xlane.f32.xlu0 %v116
    %v129 = vpop.xlane.xlu0 %128
    %130 = vadd.xlane.f32.xlu0 %v117
    %v131 = vpop.xlane.xlu0 %130
    %132 = vadd.xlane.f32.xlu0 %v118
    %v133 = vpop.xlane.xlu0 %132
    %134 = vadd.xlane.f32.xlu0 %v119
    %v135 = vpop.xlane.xlu0 %134
    %v136 = vrsqrt.pop %v121
    %v137 = vmul.f32 %v121, %v136
    %vm138 = vcmp.eq.f32.partialorder %v121, inf
    %v139 = vsel %vm138, %v121, %v137
    %vm140 = vcmp.eq.f32.partialorder %v121, 0.0
    %v141 = vand.u32 %v121, 2147483648
    %v142 = vsel %vm140, %v141, %v139
    %v143 = vrsqrt.pop %v123
    %v144 = vmul.f32 %v123, %v143
    %vm145 = vcmp.eq.f32.partialorder %v123, inf
    %v146 = vsel %vm145, %v123, %v144
    %vm147 = vcmp.eq.f32.partialorder %v123, 0.0
    %v148 = vand.u32 %v123, 2147483648
    %v149 = vsel %vm147, %v148, %v146
    %v150 = vrsqrt.pop %v125
    %v151 = vmul.f32 %v125, %v150
    %vm152 = vcmp.eq.f32.partialorder %v125, inf
    %v153 = vsel %vm152, %v125, %v151
    %vm154 = vcmp.eq.f32.partialorder %v125, 0.0
    %v155 = vand.u32 %v125, 2147483648
    %v156 = vsel %vm154, %v155, %v153
    %v157 = vrsqrt.pop %v127
    %v158 = vmul.f32 %v127, %v157
    %vm159 = vcmp.eq.f32.partialorder %v127, inf
    %v160 = vsel %vm159, %v127, %v158
    %vm161 = vcmp.eq.f32.partialorder %v127, 0.0
    %v162 = vand.u32 %v127, 2147483648
    %v163 = vsel %vm161, %v162, %v160
    %v164 = vrsqrt.pop %v129
    %v165 = vmul.f32 %v129, %v164
    %vm166 = vcmp.eq.f32.partialorder %v129, inf
    %v167 = vsel %vm166, %v129, %v165
    %vm168 = vcmp.eq.f32.partialorder %v129, 0.0
    %v169 = vand.u32 %v129, 2147483648
    %v170 = vsel %vm168, %v169, %v167
    %v171 = vrsqrt.pop %v131
    %v172 = vmul.f32 %v131, %v171
    %vm173 = vcmp.eq.f32.partialorder %v131, inf
    %v174 = vsel %vm173, %v131, %v172
    %vm175 = vcmp.eq.f32.partialorder %v131, 0.0
    %v176 = vand.u32 %v131, 2147483648
    %v177 = vsel %vm175, %v176, %v174
    %v178 = vrsqrt.pop %v133
    %v179 = vmul.f32 %v133, %v178
    %vm180 = vcmp.eq.f32.partialorder %v133, inf
    %v181 = vsel %vm180, %v133, %v179
    %vm182 = vcmp.eq.f32.partialorder %v133, 0.0
    %v183 = vand.u32 %v133, 2147483648
    %v184 = vsel %vm182, %v183, %v181
    %v185 = vrsqrt.pop %v135
    %v186 = vmul.f32 %v135, %v185
    %vm187 = vcmp.eq.f32.partialorder %v135, inf
    %v188 = vsel %vm187, %v135, %v186
    %vm189 = vcmp.eq.f32.partialorder %v135, 0.0
    %v190 = vand.u32 %v135, 2147483648
    %v191 = vsel %vm189, %v190, %v188
    %v192 = vmul.f32 %v104, %v104
    %v193 = vmul.f32 %v105, %v105
    %v194 = vmul.f32 %v106, %v106
    %v195 = vmul.f32 %v107, %v107
    %v196 = vmul.f32 %v108, %v108
    %v197 = vmul.f32 %v109, %v109
    %v198 = vmul.f32 %v110, %v110
    %v199 = vmul.f32 %v111, %v111
    %200 = vadd.xlane.f32.xlu0 %v192
    %v201 = vpop.xlane.xlu0 %200
    %202 = vadd.xlane.f32.xlu0 %v193
    %v203 = vpop.xlane.xlu0 %202
    %204 = vadd.xlane.f32.xlu0 %v194
    %v205 = vpop.xlane.xlu0 %204
    %206 = vadd.xlane.f32.xlu0 %v195
    %v207 = vpop.xlane.xlu0 %206
    %208 = vadd.xlane.f32.xlu0 %v196
    %v209 = vpop.xlane.xlu0 %208
    %210 = vadd.xlane.f32.xlu0 %v197
    %v211 = vpop.xlane.xlu0 %210
    %212 = vadd.xlane.f32.xlu0 %v198
    %v213 = vpop.xlane.xlu0 %212
    %214 = vadd.xlane.f32.xlu0 %v199
    %v215 = vpop.xlane.xlu0 %214
    %v216 = vrsqrt.pop %v201
    %v217 = vmul.f32 %v201, %v216
    %vm218 = vcmp.eq.f32.partialorder %v201, inf
    %v219 = vsel %vm218, %v201, %v217
    %vm220 = vcmp.eq.f32.partialorder %v201, 0.0
    %v221 = vand.u32 %v201, 2147483648
    %v222 = vsel %vm220, %v221, %v219
    %v223 = vrsqrt.pop %v203
    %v224 = vmul.f32 %v203, %v223
    %vm225 = vcmp.eq.f32.partialorder %v203, inf
    %v226 = vsel %vm225, %v203, %v224
    %vm227 = vcmp.eq.f32.partialorder %v203, 0.0
    %v228 = vand.u32 %v203, 2147483648
    %v229 = vsel %vm227, %v228, %v226
    %v230 = vrsqrt.pop %v205
    %v231 = vmul.f32 %v205, %v230
    %vm232 = vcmp.eq.f32.partialorder %v205, inf
    %v233 = vsel %vm232, %v205, %v231
    %vm234 = vcmp.eq.f32.partialorder %v205, 0.0
    %v235 = vand.u32 %v205, 2147483648
    %v236 = vsel %vm234, %v235, %v233
    %v237 = vrsqrt.pop %v207
    %v238 = vmul.f32 %v207, %v237
    %vm239 = vcmp.eq.f32.partialorder %v207, inf
    %v240 = vsel %vm239, %v207, %v238
    %vm241 = vcmp.eq.f32.partialorder %v207, 0.0
    %v242 = vand.u32 %v207, 2147483648
    %v243 = vsel %vm241, %v242, %v240
    %v244 = vrsqrt.pop %v209
    %v245 = vmul.f32 %v209, %v244
    %vm246 = vcmp.eq.f32.partialorder %v209, inf
    %v247 = vsel %vm246, %v209, %v245
    %vm248 = vcmp.eq.f32.partialorder %v209, 0.0
    %v249 = vand.u32 %v209, 2147483648
    %v250 = vsel %vm248, %v249, %v247
    %v251 = vrsqrt.pop %v211
    %v252 = vmul.f32 %v211, %v251
    %vm253 = vcmp.eq.f32.partialorder %v211, inf
    %v254 = vsel %vm253, %v211, %v252
    %vm255 = vcmp.eq.f32.partialorder %v211, 0.0
    %v256 = vand.u32 %v211, 2147483648
    %v257 = vsel %vm255, %v256, %v254
    %v258 = vrsqrt.pop %v213
    %v259 = vmul.f32 %v213, %v258
    %vm260 = vcmp.eq.f32.partialorder %v213, inf
    %v261 = vsel %vm260, %v213, %v259
    %vm262 = vcmp.eq.f32.partialorder %v213, 0.0
    %v263 = vand.u32 %v213, 2147483648
    %v264 = vsel %vm262, %v263, %v261
    %v265 = vrsqrt.pop %v215
    %v266 = vmul.f32 %v215, %v265
    %vm267 = vcmp.eq.f32.partialorder %v215, inf
    %v268 = vsel %vm267, %v215, %v266
    %vm269 = vcmp.eq.f32.partialorder %v215, 0.0
    %v270 = vand.u32 %v215, 2147483648
    %v271 = vsel %vm269, %v270, %v268
    %v272 = vsub.f32 %v142, %v222
    %v273 = vsub.f32 %v149, %v229
    %v274 = vsub.f32 %v156, %v236
    %v275 = vsub.f32 %v163, %v243
    %v276 = vsub.f32 %v170, %v250
    %v277 = vsub.f32 %v177, %v257
    %v278 = vsub.f32 %v184, %v264
    %v279 = vsub.f32 %v191, %v271
    %v280 = vadd.f32 %v272, 1.0
    %v281 = vadd.f32 %v273, 1.0
    %v282 = vadd.f32 %v274, 1.0
    %v283 = vadd.f32 %v275, 1.0
    %v284 = vadd.f32 %v276, 1.0
    %v285 = vadd.f32 %v277, 1.0
    %v286 = vadd.f32 %v278, 1.0
    %v287 = vadd.f32 %v279, 1.0
    %v288 = vmax.f32 %v280, 0.0
    %v289 = vmax.f32 %v281, 0.0
    %v290 = vmax.f32 %v282, 0.0
    %v291 = vmax.f32 %v283, 0.0
    %v292 = vmax.f32 %v284, 0.0
    %v293 = vmax.f32 %v285, 0.0
    %v294 = vmax.f32 %v286, 0.0
    %v295 = vmax.f32 %v287, 0.0
    %v304 = vlaneseq
    %v305 = vand.u32 %v304, 127
    %v306 = vlaneseq
    %v307 = vshrl.u32 %v306, 7
    %v308 = vsub.s32 %v305, %v307
    %v309 = vrot.slane %v288, %v308
    %v310 = vadd.s32 %v305, 4294967288
    %v311 = vlaneseq
    %v312 = vshrl.u32 %v311, 7
    %v313 = vsub.s32 %v310, %v312
    %v314 = vrot.slane %v289, %v313
    %vm315 = vcmask 130112
    %v316 = vsel %vm315, %v314, %v309
    %v317 = vadd.s32 %v305, 4294967280
    %v318 = vlaneseq
    %v319 = vshrl.u32 %v318, 7
    %v320 = vsub.s32 %v317, %v319
    %v321 = vrot.slane %v290, %v320
    %vm322 = vcmask 195712
    %v323 = vsel %vm322, %v321, %v316
    %v324 = vadd.s32 %v305, 4294967272
    %v325 = vlaneseq
    %v326 = vshrl.u32 %v325, 7
    %v327 = vsub.s32 %v324, %v326
    %v328 = vrot.slane %v291, %v327
    %vm329 = vcmask 261312
    %v330 = vsel %vm329, %v328, %v323
    %v331 = vadd.s32 %v305, 4294967264
    %v332 = vlaneseq
    %v333 = vshrl.u32 %v332, 7
    %v334 = vsub.s32 %v331, %v333
    %v335 = vrot.slane %v292, %v334
    %vm336 = vcmask 326912
    %v337 = vsel %vm336, %v335, %v330
    %v338 = vadd.s32 %v305, 4294967256
    %v339 = vlaneseq
    %v340 = vshrl.u32 %v339, 7
    %v341 = vsub.s32 %v338, %v340
    %v342 = vrot.slane %v293, %v341
    %vm343 = vcmask 392512
    %v344 = vsel %vm343, %v342, %v337
    %v345 = vadd.s32 %v305, 4294967248
    %v346 = vlaneseq
    %v347 = vshrl.u32 %v346, 7
    %v348 = vsub.s32 %v345, %v347
    %v349 = vrot.slane %v294, %v348
    %vm350 = vcmask 458112
    %v351 = vsel %vm350, %v349, %v344
    %v352 = vadd.s32 %v305, 4294967240
    %v353 = vlaneseq
    %v354 = vshrl.u32 %v353, 7
    %v355 = vsub.s32 %v352, %v354
    %v356 = vrot.slane %v295, %v355
    %vm357 = vcmask 523712
    %v358 = vsel %vm357, %v356, %v351
    %vm360 = vcmask 516096
    %361 = vst.msk [vmem:[#allocation8] sm:$0x1] %vm360, %v358
    // Predicated region
    $region26: #{tpu_custom_call.1} parent=1 // pred_check
      _
    $region27: #{tpu_custom_call.1} parent=1 // pred_check_branch
      %363 = sbr.rel (0) target = $region29
    $region28: #{tpu_custom_call.1} parent=1 // pred_region
      %s365 = ssub.s32 16, 16
      %366 = vsyncadd [#allocation4], %s365
      %s368 = sshll.u32 [#allocation8], 4
      %s369 = int_to_ptr.vmem [resolvable:$true] %s368
      %371 = dma.vmem_to_hbm [thread:$0]  %s369, 16, %s3, [#allocation4]
    $region29: #{tpu_custom_call.1} parent=1 // pred_fallthru
      _
    // Predicated region
    $region30: #{tpu_custom_call.1} parent=1 // pred_check
      _
    $region31: #{tpu_custom_call.1} parent=1 // pred_check_branch
      %373 = sbr.rel (0) target = $region33
    $region32: #{tpu_custom_call.1} parent=1 // pred_region
      %374 = dma.done [#allocation4], 16
    $region33: #{tpu_custom_call.1} parent=1 // pred_fallthru
      _
    %375 = vsyncpa [#allocation3], 1
    %376 = vsyncpa [#allocation6], 1
    %377 = vsyncpa [#allocation4], 1

</llo_original>
